<compile_context>
chip_gen: v5e
topology: v5e:2x2
jax: 0.10.0
libtpu: 0.0.40
codegen_flags: <defaults>
</compile_context>

<pallas_src>
import functools

import jax
import jax.numpy as jnp
from jax.experimental import pallas as pl
from jax.experimental.pallas import tpu as pltpu


def _round_up(x, m):
    return ((x + m - 1) // m) * m


def _static_pow(d, gamma):
    """d ** gamma with integer gamma lowered to multiplies (VPU, no EUP pow)."""
    g = float(gamma)
    if g == int(g) and g >= 0:
        p = int(g)
        if p == 0:
            return jnp.ones_like(d)
        result = None
        base = d
        while p:
            if p & 1:
                result = base if result is None else result * base
            p >>= 1
            if p:
                base = base * base
        return result
    return jnp.power(d, g)


def _focal_loss_kernel(*refs, gamma, tile_n, n_rows, has_weight):
    if has_weight:
        x_ref, t_ref, w_ref, part_ref = refs
    else:
        x_ref, t_ref, part_ref = refs
        w_ref = None

    x = x_ref[...].astype(jnp.float32)          # (T, Cp)  cast in-kernel
    t = t_ref[...]                              # (T, 1)   int32

    # --- per-row log-softmax pieces (padded classes are -1e30 -> exp ~ 0) ---
    m = jnp.max(x, axis=-1, keepdims=True)                               # (T,1)
    lse = jnp.log(jnp.sum(jnp.exp(x - m), axis=-1, keepdims=True)) + m   # (T,1)

    # --- select the target-class logit (and weight) with a lane-iota mask ---
    col = jax.lax.broadcasted_iota(jnp.int32, x.shape, 1)                # (T,Cp)
    hit = col == t                                                       # (T,Cp)
    x_t = jnp.sum(jnp.where(hit, x, 0.0), axis=-1, keepdims=True)        # (T,1)

    ce = lse - x_t                                                       # (T,1)
    if has_weight:
        w_full = jnp.broadcast_to(w_ref[...], x.shape)                   # (T,Cp)
        w_t = jnp.sum(jnp.where(hit, w_full, 0.0), axis=-1, keepdims=True)
        ce = w_t * ce

    # --- focal modulation (clamped, integer-gamma fast path) ---
    pt = jnp.exp(-ce)
    d = jnp.maximum(1.0 - pt, 0.0)        # ce can round slightly negative
    focal = _static_pow(d, gamma) * ce                                   # (T,1)

    # --- zero padded rows (global row index >= n_rows) ---
    row = (jax.lax.broadcasted_iota(jnp.int32, focal.shape, 0)
           + pl.program_id(0) * tile_n)
    focal = jnp.where(row < n_rows, focal, 0.0)

    part = jnp.sum(focal)

    # lane-dense partial-sum block: partial at [0,0], zeros elsewhere
    rr = jax.lax.broadcasted_iota(jnp.int32, part_ref.shape, 0)
    cc = jax.lax.broadcasted_iota(jnp.int32, part_ref.shape, 1)
    part_ref[...] = jnp.where((rr == 0) & (cc == 0), part, 0.0)


def focal_loss(logits, targets, gamma=2.0, weight=None):
    """Matches FocalLoss.forward(logits, targets) of the PyTorch module."""
    N, C = logits.shape
    C_pad = _round_up(C, 128)

    # Row tile: multiple of 8, big enough to pipeline well, small enough that
    # the double-buffered logits tile stays well inside v7x's VMEM budget.
    itemsize = jnp.dtype(logits.dtype).itemsize
    tile_n = min(512, _round_up(N, 8))
    while tile_n > 8 and tile_n * C_pad * itemsize > (4 << 20):
        tile_n //= 2
    N_pad = _round_up(N, tile_n)
    num_tiles = N_pad // tile_n

    NEG = -1e30  # "minus infinity" fill that avoids inf-inf NaNs
    x = logits
    if (N_pad, C_pad) != (N, C):
        x = jnp.pad(x, ((0, N_pad - N), (0, C_pad - C)), constant_values=NEG)
    t = targets.astype(jnp.int32).reshape(N, 1)
    if N_pad != N:
        t = jnp.pad(t, ((0, N_pad - N), (0, 0)))

    args = [x, t]
    in_specs = [
        pl.BlockSpec((tile_n, C_pad), lambda i: (i, 0)),
        pl.BlockSpec((tile_n, 1), lambda i: (i, 0)),
    ]
    if weight is not None:
        w = jnp.asarray(weight, jnp.float32).reshape(1, C)
        if C_pad != C:
            w = jnp.pad(w, ((0, 0), (0, C_pad - C)))
        args.append(w)
        in_specs.append(pl.BlockSpec((1, C_pad), lambda i: (0, 0)))

    kernel = functools.partial(
        _focal_loss_kernel, gamma=float(gamma), tile_n=tile_n, n_rows=N,
        has_weight=weight is not None)

    cost = pl.CostEstimate(
        flops=int(8 * N_pad * C_pad),
        transcendentals=int(N_pad * C_pad + 4 * N_pad),
        bytes_accessed=int(N_pad * C_pad * itemsize + N_pad * 4
                           + num_tiles * 8 * 128 * 4
                           + (C_pad * 4 if weight is not None else 0)),
    )

    parts = pl.pallas_call(
        kernel,
        out_shape=jax.ShapeDtypeStruct((num_tiles * 8, 128), jnp.float32),
        grid=(num_tiles,),
        in_specs=in_specs,
        out_specs=pl.BlockSpec((8, 128), lambda i: (i, 0)),
        compiler_params=pltpu.CompilerParams(
            dimension_semantics=("parallel",),
            vmem_limit_bytes=32 * 1024 * 1024),
        cost_estimate=cost,
    )(*args)

    # mean: padded rows contribute exactly 0, so sum(partials) / N is exact
    return jnp.sum(parts) * (1.0 / N)


def _focal_loss_ref(logits, targets, gamma=2.0, weight=None):
    """Pure-JAX reference mirroring torch.nn.functional.cross_entropy path."""
    x = logits.astype(jnp.float32)
    lse = jax.scipy.special.logsumexp(x, axis=-1)
    x_t = jnp.take_along_axis(x, targets[:, None].astype(jnp.int32), axis=-1)[:, 0]
    ce = lse - x_t
    if weight is not None:
        ce = ce * jnp.asarray(weight, jnp.float32)[targets]
    pt = jnp.exp(-ce)
    return jnp.mean((1.0 - pt) ** gamma * ce)


if __name__ == "__main__":
    key = jax.random.PRNGKey(0)
    k1, k2, k3, k4, k5 = jax.random.split(key, 5)

    # Primary small case consistent with the module: batch=8, classes=16.
    N, C = 8, 16
    logits = jax.random.normal(k1, (N, C), dtype=jnp.float32)
    targets = jax.random.randint(k2, (N,), 0, C, dtype=jnp.int32)

    loss = focal_loss(logits, targets, gamma=2.0, weight=None)
    jax.block_until_ready(loss)
    ref = _focal_loss_ref(logits, targets, gamma=2.0, weight=None)
    assert jnp.allclose(loss, ref, rtol=1e-5, atol=1e-6), (loss, ref)

    # Multi-tile case with row/class padding and class weights (grid path).
    N2, C2 = 1030, 37
    logits2 = jax.random.normal(k3, (N2, C2), dtype=jnp.float32)
    targets2 = jax.random.randint(k4, (N2,), 0, C2, dtype=jnp.int32)
    w2 = jax.random.uniform(k5, (C2,), jnp.float32, 0.5, 1.5)

    loss2 = focal_loss(logits2, targets2, gamma=2.0, weight=w2)
    jax.block_until_ready(loss2)
    ref2 = _focal_loss_ref(logits2, targets2, gamma=2.0, weight=w2)
    assert jnp.allclose(loss2, ref2, rtol=1e-4, atol=1e-5), (loss2, ref2)

    print("KERNEL_OK")
</pallas_src>

<mosaic_0001>
module attributes {stable_mosaic.version = 11 : i64} {
  func.func @_focal_loss_kernel(%arg0: i32, %arg1: memref<8x128xf32, #tpu.memory_space<vmem>>, %arg2: memref<8x1xi32, #tpu.memory_space<vmem>>, %arg3: memref<8x128xf32, #tpu.memory_space<vmem>>) attributes {dimension_semantics = [#tpu.dimension_semantics<parallel>], iteration_bounds = array<i64: 1>, scalar_prefetch = 0 : i64, scratch_operands = 0 : i64, tpu.core_type = #tpu.core_type<tc>, window_params = [{transform_indices = @transform_0, window_bounds = array<i64: 8, 128>}, {transform_indices = @transform_1, window_bounds = array<i64: 8, 1>}, {transform_indices = @transform_2, window_bounds = array<i64: 8, 128>}]} {
    %c0 = arith.constant 0 : index
    %c0_0 = arith.constant 0 : index
    %0 = vector.load %arg1[%c0, %c0_0] : memref<8x128xf32, #tpu.memory_space<vmem>>, vector<8x128xf32>
    %c0_1 = arith.constant 0 : index
    %c0_2 = arith.constant 0 : index
    %1 = vector.load %arg2[%c0_1, %c0_2] : memref<8x1xi32, #tpu.memory_space<vmem>>, vector<8x1xi32>
    %cst = arith.constant dense<0xFF800000> : vector<8xf32>
    %2 = vector.multi_reduction <maximumf>, %0, %cst [1] : vector<8x128xf32> to vector<8xf32>
    %3 = vector.shape_cast %2 : vector<8xf32> to vector<8x1xf32>
    %4 = vector.broadcast %3 : vector<8x1xf32> to vector<8x128xf32>
    %5 = arith.subf %0, %4 : vector<8x128xf32>
    %6 = math.exp %5 : vector<8x128xf32>
    %cst_3 = arith.constant dense<0.000000e+00> : vector<8xf32>
    %7 = vector.multi_reduction <add>, %6, %cst_3 [1] : vector<8x128xf32> to vector<8xf32>
    %8 = vector.shape_cast %7 : vector<8xf32> to vector<8x1xf32>
    %9 = math.log %8 : vector<8x1xf32>
    %10 = arith.addf %9, %3 : vector<8x1xf32>
    %11 = tpu.iota {dimensions = array<i32: 1>} : vector<8x128xi32>
    %12 = vector.broadcast %1 : vector<8x1xi32> to vector<8x128xi32>
    %13 = arith.cmpi eq, %11, %12 : vector<8x128xi32>
    %cst_4 = arith.constant 0.000000e+00 : f32
    %14 = vector.broadcast %cst_4 : f32 to vector<8x128xf32>
    %15 = arith.select %13, %0, %14 : vector<8x128xi1>, vector<8x128xf32>
    %cst_5 = arith.constant dense<0.000000e+00> : vector<8xf32>
    %16 = vector.multi_reduction <add>, %15, %cst_5 [1] : vector<8x128xf32> to vector<8xf32>
    %17 = vector.shape_cast %16 : vector<8xf32> to vector<8x1xf32>
    %18 = arith.subf %10, %17 : vector<8x1xf32>
    %cst_6 = arith.constant 0.000000e+00 : f32
    %19 = vector.broadcast %cst_6 : f32 to vector<8x1xf32>
    %20 = arith.subf %19, %18 : vector<8x1xf32>
    %21 = math.exp %20 : vector<8x1xf32>
    %cst_7 = arith.constant 1.000000e+00 : f32
    %22 = vector.broadcast %cst_7 : f32 to vector<8x1xf32>
    %23 = arith.subf %22, %21 : vector<8x1xf32>
    %cst_8 = arith.constant 0.000000e+00 : f32
    %24 = vector.broadcast %cst_8 : f32 to vector<8x1xf32>
    %25 = arith.maximumf %23, %24 : vector<8x1xf32>
    %26 = arith.mulf %25, %25 : vector<8x1xf32>
    %27 = arith.mulf %26, %18 : vector<8x1xf32>
    %28 = tpu.iota {dimensions = array<i32: 0>} : vector<8x1xi32>
    %c8_i32 = arith.constant 8 : i32
    %29 = arith.muli %arg0, %c8_i32 : i32
    %30 = vector.broadcast %29 : i32 to vector<8x1xi32>
    %31 = arith.addi %28, %30 : vector<8x1xi32>
    %c8_i32_9 = arith.constant 8 : i32
    %32 = vector.broadcast %c8_i32_9 : i32 to vector<8x1xi32>
    %33 = arith.cmpi slt, %31, %32 : vector<8x1xi32>
    %cst_10 = arith.constant 0.000000e+00 : f32
    %34 = vector.broadcast %cst_10 : f32 to vector<8x1xf32>
    %35 = arith.select %33, %27, %34 : vector<8x1xi1>, vector<8x1xf32>
    %36 = vector.shape_cast %35 : vector<8x1xf32> to vector<1x8x1xf32>
    %cst_11 = arith.constant dense<0.000000e+00> : vector<1xf32>
    %37 = vector.multi_reduction <add>, %36, %cst_11 [1, 2] : vector<1x8x1xf32> to vector<1xf32>
    %38 = vector.shape_cast %37 : vector<1xf32> to vector<1x1x1xf32>
    %39 = vector.extract %38[0, 0, 0] : f32 from vector<1x1x1xf32>
    %40 = tpu.iota {dimensions = array<i32: 0>} : vector<8x128xi32>
    %41 = tpu.iota {dimensions = array<i32: 1>} : vector<8x128xi32>
    %c0_i32 = arith.constant 0 : i32
    %42 = vector.broadcast %c0_i32 : i32 to vector<8x128xi32>
    %43 = arith.cmpi eq, %40, %42 : vector<8x128xi32>
    %c0_i32_12 = arith.constant 0 : i32
    %44 = vector.broadcast %c0_i32_12 : i32 to vector<8x128xi32>
    %45 = arith.cmpi eq, %41, %44 : vector<8x128xi32>
    %46 = arith.andi %43, %45 : vector<8x128xi1>
    %cst_13 = arith.constant 0.000000e+00 : f32
    %47 = vector.broadcast %39 : f32 to vector<8x128xf32>
    %48 = vector.broadcast %cst_13 : f32 to vector<8x128xf32>
    %49 = arith.select %46, %47, %48 : vector<8x128xi1>, vector<8x128xf32>
    %c0_14 = arith.constant 0 : index
    %c0_15 = arith.constant 0 : index
    %50 = vector.load %arg3[%c0_14, %c0_15] : memref<8x128xf32, #tpu.memory_space<vmem>>, vector<8x128xf32>
    tpu.vector_store %arg3[%c0_14, %c0_15], %49 {strides = array<i32>} : memref<8x128xf32, #tpu.memory_space<vmem>>, vector<8x128xf32>,
    return
  }
  func.func @transform_0(%arg0: i32) -> (i32, i32) {
    %c0_i32 = arith.constant 0 : i32
    %c0_i32_0 = arith.constant 0 : i32
    return %arg0, %c0_i32 : i32, i32
  }
  func.func @transform_1(%arg0: i32) -> (i32, i32) {
    %c0_i32 = arith.constant 0 : i32
    %c0_i32_0 = arith.constant 0 : i32
    return %arg0, %c0_i32 : i32, i32
  }
  func.func @transform_2(%arg0: i32) -> (i32, i32) {
    %c0_i32 = arith.constant 0 : i32
    %c0_i32_0 = arith.constant 0 : i32
    return %arg0, %c0_i32 : i32, i32
  }
}

</mosaic_0001>

<llo_original>
// kernel: tpu_custom_call.1
$region0: #{tpu_custom_call.1}
  #allocation0 [shape = 'u32[]', space=smem, size = 0x4, offset = 0x4, fixed_abs, tag = 'smem constant byte address 0x4 - core index']
  #allocation1 [shape = 'u32[72,128]{1,0:T(1,128)}', space=vmem, size = 0x9000, scoped, tag = 'internal scratch']
  %s0 = inlined_call_operand.vmem [shape: f32[8,128], index: 0, kind: input, shape index: {}]
  %s1 = inlined_call_operand.vmem [shape: s32[8,1], index: 1, kind: input, shape index: {}]
  %s2 = inlined_call_operand.hbm [shape: f32[8,128], index: 2, kind: output, shape index: {}]
  %s3 = sld [smem:[#allocation0]]
  $region18: #{tpu_custom_call.1} parent=0
    _
  %s5 = ssub.s32 1, %s3
  %s6 = scalar_select 0, %s5, %s3
  $region1: #{tpu_custom_call.1} parent=0
    #allocation2 [shape = 'u8[4096]{0}', space=vmem, size = 0x1000, scoped, tag = 'output window, operand 0, single buffered']
    #allocation3 [shape = 's32[1]{0}', space=sflag, size = 0x4, scoped, tag = 'scoped memory for tpu_custom_call.1']
    %7 = vsyncpa [#allocation3], 0
    // Predicated region
    $region2: #{tpu_custom_call.1} parent=1 // pred_check
      _
    $region3: #{tpu_custom_call.1} parent=1 // pred_check_branch
      %9 = sbr.rel (0) target = $region5
    $region4: #{tpu_custom_call.1} parent=1 // pred_region
      _
    $region5: #{tpu_custom_call.1} parent=1 // pred_fallthru
      _
    // Predicated region
    $region6: #{tpu_custom_call.1} parent=1 // pred_check
      _
    $region7: #{tpu_custom_call.1} parent=1 // pred_check_branch
      %11 = sbr.rel (0) target = $region9
    $region8: #{tpu_custom_call.1} parent=1 // pred_region
      _
    $region9: #{tpu_custom_call.1} parent=1 // pred_fallthru
      _
    %v12 = vld [vmem:[%s0] sm:$0xff]
    %v13 = vld [vmem:[%s1] sm:$0xff]
    %14 = vmax.xlane.f32.xlu0 %v12
    %v15 = vpop.xlane.xlu0 %14
    %v16 = vsub.f32 %v12, %v15
    %v17 = vmul.f32 %v16, 1.442695
    %v18 = vpow.pop %v17
    %19 = vadd.xlane.f32.xlu0 %v18
    %v20 = vpop.xlane.xlu0 %19
    %v21 = vlog2.pop %v20
    %v22 = vmul.f32 %v21, 0.6931472
    %v23 = vadd.f32 %v22, %v15
    %v24 = vlaneseq
    %v25 = vand.u32 %v24, 127
    %26 = vset.pattern.permute.xlu0 0
    %27 = vperm.xlu0 %26, %v13
    %v28 = vpop.permute.xlu0 %27
    %vm29 = vcmp.eq.s32.totalorder %v25, %v28
    %v30 = vsel %vm29, %v12, 0.0
    %31 = vadd.xlane.f32.xlu0 %v30
    %v32 = vpop.xlane.xlu0 %31
    %v33 = vsub.f32 %v23, %v32
    %v34 = vsub.f32 0.0, %v33
    %v35 = vmul.f32 %v34, 1.442695
    %v36 = vpow.pop %v35
    %v37 = vsub.f32 1.0, %v36
    %v38 = vmax.f32 %v37, 0.0
    %v39 = vmul.f32 %v38, %v38
    %v40 = vmul.f32 %v39, %v33
    %v41 = vlaneseq
    %v42 = vshrl.u32 %v41, 7
    %s43 = smul.u32 0, 8
    %v44 = vstv %s43
    %v45 = vadd.s32 %v42, %v44
    %vm46 = vcmp.lt.s32.totalorder %v45, 8
    %v47 = vsel %vm46, %v40, 0.0
    %vm48 = vcmask 7168
    %v49 = vsel %vm48, %v47, 0.0
    %50 = vadd.xlane.f32.xlu0 %v49
    %v51 = vpop.xlane.xlu0 %50
    %v52 = vrot.slane %v51, 4
    %v53 = vadd.f32 %v51, %v52
    %v54 = vrot.slane %v53, 2
    %v55 = vadd.f32 %v53, %v54
    %v56 = vrot.slane %v55, 1
    %v57 = vadd.f32 %v55, %v56
    %s58 = vtos %v57
    %vm59 = vcmp.eq.s32.totalorder %v42, 0
    %vm60 = vcmp.eq.s32.totalorder %v25, 0
    %vm61 = vmand %vm59, %vm60
    %v62 = vstv %s58
    %v63 = vsel %vm61, %v62, 0.0
    %64 = vst [vmem:[#allocation2] sm:$0xff] %v63
    // Predicated region
    $region10: #{tpu_custom_call.1} parent=1 // pred_check
      _
    $region11: #{tpu_custom_call.1} parent=1 // pred_check_branch
      %66 = sbr.rel (0) target = $region13
    $region12: #{tpu_custom_call.1} parent=1 // pred_region
      %68 = vsyncadd [#allocation3], 0
      %s70 = sshll.u32 [#allocation2], 4
      %s71 = int_to_ptr.vmem [resolvable:$true] %s70
      %s72 = sshll.u32 %s2, 4
      %s73 = int_to_ptr.hbm [resolvable:$true] %s72
      %75 = dma.vmem_to_hbm [thread:$0]  %s71, 128, %s73, [#allocation3]
    $region13: #{tpu_custom_call.1} parent=1 // pred_fallthru
      _
    // Predicated region
    $region14: #{tpu_custom_call.1} parent=1 // pred_check
      _
    $region15: #{tpu_custom_call.1} parent=1 // pred_check_branch
      %77 = sbr.rel (0) target = $region17
    $region16: #{tpu_custom_call.1} parent=1 // pred_region
      %79 = dma.done [#allocation3], 128
    $region17: #{tpu_custom_call.1} parent=1 // pred_fallthru
      _
    %80 = vsyncpa [#allocation3], 1

</llo_original>
